<compile_context>
chip_gen: v7x
topology: tpu7x:2x2x1
jax: 0.10.0
libtpu: 0.0.40
codegen_flags: <defaults>
</compile_context>

<pallas_src>
import jax
import jax.numpy as jnp
from jax.experimental import pallas as pl
from jax.experimental.pallas import tpu as pltpu

BN_EPS = 1e-5


def _round_up(x, m):
    return ((x + m - 1) // m) * m


# ---------------------------------------------------------------------------
# Pass 1: folded 1x1 conv (matmul) + per-tile BN partial sums.
# ---------------------------------------------------------------------------
def _conv_stats_kernel(cat_ref, w_ref, y_ref, psum_ref, psq_ref):
    # cat_ref: (4C, TILE_P)  corners [a|b|c|d] on sublanes, pixels on lanes.
    # w_ref:   (Cout, 4C)    Haar-folded conv weight (resident across steps).
    y = jnp.dot(w_ref[...], cat_ref[...],
                preferred_element_type=jnp.float32)      # (Cout, TILE_P)
    y_ref[...] = y
    # Per-channel partials for the two-pass training-mode BatchNorm.
    psum_ref[0] = jnp.sum(y, axis=1, keepdims=True)      # (Cout, 1)
    psq_ref[0] = jnp.sum(y * y, axis=1, keepdims=True)   # (Cout, 1)


# ---------------------------------------------------------------------------
# Pass 2: per-channel affine (BN folded into scale/shift) + ReLU.
# ---------------------------------------------------------------------------
def _bn_relu_kernel(y_ref, scale_ref, shift_ref, o_ref):
    y = y_ref[...]                                       # (Cout, TILE_P)
    o_ref[...] = jnp.maximum(y * scale_ref[...] + shift_ref[...],
                             0.0).astype(o_ref.dtype)


def down_wt(x, conv_w, conv_b, bn_gamma, bn_beta, *, tile_p=4096):
    """x: (N, C, H, W) float32, H and W even. Returns (N, Cout, H//2, W//2)."""
    N, C, H, W = x.shape
    H2, W2 = H // 2, W // 2
    P = N * H2 * W2
    Cout = conv_w.shape[0]
    K = 4 * C

    # ---- One fused layout transform: NCHW -> (4C, P), rows = [a|b|c|d].
    x6 = x.astype(jnp.float32).reshape(N, C, H2, 2, W2, 2)
    cat = jnp.transpose(x6, (3, 5, 1, 0, 2, 4)).reshape(K, P)

    # ---- Tile the pixel (lane) axis; pad to a multiple of the tile.
    tile = _round_up(min(tile_p, _round_up(P, 128)), 128)
    P_pad = _round_up(P, tile)
    if P_pad != P:
        # Zero columns -> zero conv output (no bias in pass 1), so BN partial
        # sums are unaffected; padded columns are sliced off at the end.
        cat = jnp.pad(cat, ((0, 0), (0, P_pad - P)))
    num_tiles = P_pad // tile

    # ---- Fold the Haar analysis into the conv weight (trace-time, tiny).
    # Module concat order: [LL, band0, band1, band2].
    w = conv_w.reshape(Cout, K).astype(jnp.float32)
    w0, w1, w2, w3 = w[:, 0:C], w[:, C:2 * C], w[:, 2 * C:3 * C], w[:, 3 * C:]
    wa = 0.5 * (w0 + w1 + w2 + w3)
    wb = 0.5 * (w0 + w1 - w2 - w3)
    wc = 0.5 * (w0 - w1 + w2 - w3)
    wd = 0.5 * (w0 - w1 - w2 + w3)
    w_folded = jnp.concatenate([wa, wb, wc, wd], axis=1)        # (Cout, 4C)

    cparams = pltpu.CompilerParams(
        dimension_semantics=("parallel",),      # per-tile partials -> both TCs on v7x
        vmem_limit_bytes=32 * 1024 * 1024,
    )

    # ---- Pass 1: tiled conv + BN partial sums.
    y, psum, psq = pl.pallas_call(
        _conv_stats_kernel,
        grid=(num_tiles,),
        in_specs=[
            pl.BlockSpec((K, tile), lambda i: (0, i)),
            pl.BlockSpec((Cout, K), lambda i: (0, 0)),
        ],
        out_specs=[
            pl.BlockSpec((Cout, tile), lambda i: (0, i)),
            pl.BlockSpec((1, Cout, 1), lambda i: (i, 0, 0)),
            pl.BlockSpec((1, Cout, 1), lambda i: (i, 0, 0)),
        ],
        out_shape=[
            jax.ShapeDtypeStruct((Cout, P_pad), jnp.float32),
            jax.ShapeDtypeStruct((num_tiles, Cout, 1), jnp.float32),
            jax.ShapeDtypeStruct((num_tiles, Cout, 1), jnp.float32),
        ],
        compiler_params=cparams,
    )(cat, w_folded)

    # ---- Batch statistics (training-mode BatchNorm2d, biased variance).
    conv_b = conv_b.astype(jnp.float32)
    sum_y = jnp.sum(psum[:, :, 0], axis=0)                      # (Cout,)
    sum_y2 = jnp.sum(psq[:, :, 0], axis=0)
    mean_nb = sum_y / P                                         # conv out w/o bias
    var = jnp.maximum(sum_y2 / P - mean_nb * mean_nb, 0.0)      # bias-independent
    inv_std = jax.lax.rsqrt(var + BN_EPS)
    scale = bn_gamma.astype(jnp.float32) * inv_std
    mean_wb = mean_nb + conv_b                                  # mean incl. conv bias
    # output = scale * (y_nb + bias - mean_wb) + beta  (bias cancels exactly)
    shift = bn_beta.astype(jnp.float32) + scale * (conv_b - mean_wb)

    scale2 = scale.reshape(Cout, 1)
    shift2 = shift.reshape(Cout, 1)

    # ---- Pass 2: tiled BN affine + ReLU (lane-dense loads/stores).
    out = pl.pallas_call(
        _bn_relu_kernel,
        grid=(num_tiles,),
        in_specs=[
            pl.BlockSpec((Cout, tile), lambda i: (0, i)),
            pl.BlockSpec((Cout, 1), lambda i: (0, 0)),
            pl.BlockSpec((Cout, 1), lambda i: (0, 0)),
        ],
        out_specs=pl.BlockSpec((Cout, tile), lambda i: (0, i)),
        out_shape=jax.ShapeDtypeStruct((Cout, P_pad), jnp.float32),
        compiler_params=cparams,
    )(y, scale2, shift2)

    # ---- Back to NCHW.
    out = out[:, :P].reshape(Cout, N, H2, W2)
    return jnp.transpose(out, (1, 0, 2, 3))


# ---------------------------------------------------------------------------
# Pure-JAX reference (same math as the PyTorch module, training-mode BN).
# ---------------------------------------------------------------------------
def _reference(x, conv_w, conv_b, bn_gamma, bn_beta):
    N, C, H, W = x.shape
    Cout = conv_w.shape[0]
    a = x[:, :, 0::2, 0::2]
    b = x[:, :, 0::2, 1::2]
    c = x[:, :, 1::2, 0::2]
    d = x[:, :, 1::2, 1::2]
    ll = (a + b + c + d) * 0.5
    b0 = (a + b - c - d) * 0.5
    b1 = (a - b + c - d) * 0.5
    b2 = (a - b - c + d) * 0.5
    cat = jnp.concatenate([ll, b0, b1, b2], axis=1)             # (N, 4C, H2, W2)
    w = conv_w.reshape(Cout, 4 * C)
    y = jnp.einsum('ok,nkhw->nohw', w, cat) + conv_b[None, :, None, None]
    mean = y.mean(axis=(0, 2, 3), keepdims=True)
    var = ((y - mean) ** 2).mean(axis=(0, 2, 3), keepdims=True)
    y = (y - mean) * jax.lax.rsqrt(var + BN_EPS)
    y = y * bn_gamma[None, :, None, None] + bn_beta[None, :, None, None]
    return jnp.maximum(y, 0.0)


if __name__ == "__main__":
    key = jax.random.PRNGKey(0)
    k_x, k_w, k_b, k_g, k_bt = jax.random.split(key, 5)

    N, in_ch, H, W = 2, 4, 16, 16
    out_ch = 8

    x = jax.random.normal(k_x, (N, in_ch, H, W), dtype=jnp.float32)
    conv_w = 0.1 * jax.random.normal(k_w, (out_ch, in_ch * 4, 1, 1), jnp.float32)
    conv_b = 0.1 * jax.random.normal(k_b, (out_ch,), jnp.float32)
    bn_gamma = 1.0 + 0.1 * jax.random.normal(k_g, (out_ch,), jnp.float32)
    bn_beta = 0.1 * jax.random.normal(k_bt, (out_ch,), jnp.float32)

    y = jax.jit(down_wt)(x, conv_w, conv_b, bn_gamma, bn_beta)
    y = jax.block_until_ready(y)
    assert y.shape == (N, out_ch, H // 2, W // 2), y.shape

    y_ref = _reference(x, conv_w, conv_b, bn_gamma, bn_beta)
    err = float(jnp.max(jnp.abs(y - y_ref)))
    assert err < 2e-4, f"max abs error vs reference: {err}"
    print("KERNEL_OK")
</pallas_src>

<mosaic_0001>
module attributes {stable_mosaic.version = 11 : i64} {
  func.func @_conv_stats_kernel(%arg0: i32, %arg1: memref<16x128xf32, #tpu.memory_space<vmem>>, %arg2: memref<8x16xf32, #tpu.memory_space<vmem>>, %arg3: memref<8x128xf32, #tpu.memory_space<vmem>>, %arg4: memref<1x8x1xf32, #tpu.memory_space<vmem>>, %arg5: memref<1x8x1xf32, #tpu.memory_space<vmem>>) attributes {dimension_semantics = [#tpu.dimension_semantics<parallel>], iteration_bounds = array<i64: 1>, scalar_prefetch = 0 : i64, scratch_operands = 0 : i64, tpu.core_type = #tpu.core_type<tc>, window_params = [{transform_indices = @transform_0, window_bounds = array<i64: 16, 128>}, {pipeline_mode = #tpu.pipeline_mode<synchronous>, transform_indices = @transform_1, window_bounds = array<i64: 8, 16>}, {transform_indices = @transform_2, window_bounds = array<i64: 8, 128>}, {transform_indices = @transform_3, window_bounds = array<i64: 1, 8, 1>}, {transform_indices = @transform_4, window_bounds = array<i64: 1, 8, 1>}]} {
    %c0 = arith.constant 0 : index
    %c0_0 = arith.constant 0 : index
    %0 = vector.load %arg2[%c0, %c0_0] : memref<8x16xf32, #tpu.memory_space<vmem>>, vector<8x16xf32>
    %c0_1 = arith.constant 0 : index
    %c0_2 = arith.constant 0 : index
    %1 = vector.load %arg1[%c0_1, %c0_2] : memref<16x128xf32, #tpu.memory_space<vmem>>, vector<16x128xf32>
    %cst = arith.constant dense<0.000000e+00> : vector<8x128xf32>
    %2 = tpu.matmul %0, %1, %cst {dimension_numbers = #tpu.dot_dimension_numbers<[1], [0], [0], [1], [0, 0, 1, 1], [], []>} : vector<8x16xf32>, vector<16x128xf32>, vector<8x128xf32> -> vector<8x128xf32>
    %c0_3 = arith.constant 0 : index
    %c0_4 = arith.constant 0 : index
    %3 = vector.load %arg3[%c0_3, %c0_4] : memref<8x128xf32, #tpu.memory_space<vmem>>, vector<8x128xf32>
    tpu.vector_store %arg3[%c0_3, %c0_4], %2 {strides = array<i32>} : memref<8x128xf32, #tpu.memory_space<vmem>>, vector<8x128xf32>,
    %cst_5 = arith.constant dense<0.000000e+00> : vector<8xf32>
    %4 = vector.multi_reduction <add>, %2, %cst_5 [1] : vector<8x128xf32> to vector<8xf32>
    %5 = vector.shape_cast %4 : vector<8xf32> to vector<8x1xf32>
    %c0_6 = arith.constant 0 : index
    %c0_7 = arith.constant 0 : index
    %c0_8 = arith.constant 0 : index
    %6 = vector.load %arg4[%c0_6, %c0_7, %c0_8] : memref<1x8x1xf32, #tpu.memory_space<vmem>>, vector<1x8x1xf32>
    %7 = vector.shape_cast %6 : vector<1x8x1xf32> to vector<8x1xf32>
    %8 = vector.shape_cast %5 : vector<8x1xf32> to vector<1x8x1xf32>
    tpu.vector_store %arg4[%c0_6, %c0_7, %c0_8], %8 {strides = array<i32>} : memref<1x8x1xf32, #tpu.memory_space<vmem>>, vector<1x8x1xf32>,
    %9 = arith.mulf %2, %2 : vector<8x128xf32>
    %cst_9 = arith.constant dense<0.000000e+00> : vector<8xf32>
    %10 = vector.multi_reduction <add>, %9, %cst_9 [1] : vector<8x128xf32> to vector<8xf32>
    %11 = vector.shape_cast %10 : vector<8xf32> to vector<8x1xf32>
    %c0_10 = arith.constant 0 : index
    %c0_11 = arith.constant 0 : index
    %c0_12 = arith.constant 0 : index
    %12 = vector.load %arg5[%c0_10, %c0_11, %c0_12] : memref<1x8x1xf32, #tpu.memory_space<vmem>>, vector<1x8x1xf32>
    %13 = vector.shape_cast %12 : vector<1x8x1xf32> to vector<8x1xf32>
    %14 = vector.shape_cast %11 : vector<8x1xf32> to vector<1x8x1xf32>
    tpu.vector_store %arg5[%c0_10, %c0_11, %c0_12], %14 {strides = array<i32>} : memref<1x8x1xf32, #tpu.memory_space<vmem>>, vector<1x8x1xf32>,
    return
  }
  func.func @transform_0(%arg0: i32) -> (i32, i32) {
    %c0_i32 = arith.constant 0 : i32
    %c0_i32_0 = arith.constant 0 : i32
    return %c0_i32, %arg0 : i32, i32
  }
  func.func @transform_1(%arg0: i32) -> (i32, i32) {
    %c0_i32 = arith.constant 0 : i32
    %c0_i32_0 = arith.constant 0 : i32
    %c0_i32_1 = arith.constant 0 : i32
    return %c0_i32, %c0_i32_0 : i32, i32
  }
  func.func @transform_2(%arg0: i32) -> (i32, i32) {
    %c0_i32 = arith.constant 0 : i32
    %c0_i32_0 = arith.constant 0 : i32
    return %c0_i32, %arg0 : i32, i32
  }
  func.func @transform_3(%arg0: i32) -> (i32, i32, i32) {
    %c0_i32 = arith.constant 0 : i32
    %c0_i32_0 = arith.constant 0 : i32
    %c0_i32_1 = arith.constant 0 : i32
    return %arg0, %c0_i32, %c0_i32_0 : i32, i32, i32
  }
  func.func @transform_4(%arg0: i32) -> (i32, i32, i32) {
    %c0_i32 = arith.constant 0 : i32
    %c0_i32_0 = arith.constant 0 : i32
    %c0_i32_1 = arith.constant 0 : i32
    return %arg0, %c0_i32, %c0_i32_0 : i32, i32, i32
  }
}

module attributes {stable_mosaic.version = 11 : i64} {
  func.func @_bn_relu_kernel(%arg0: i32, %arg1: memref<8x128xf32, #tpu.memory_space<vmem>>, %arg2: memref<8x1xf32, #tpu.memory_space<vmem>>, %arg3: memref<8x1xf32, #tpu.memory_space<vmem>>, %arg4: memref<8x128xf32, #tpu.memory_space<vmem>>) attributes {dimension_semantics = [#tpu.dimension_semantics<parallel>], iteration_bounds = array<i64: 1>, scalar_prefetch = 0 : i64, scratch_operands = 0 : i64, tpu.core_type = #tpu.core_type<tc>, window_params = [{transform_indices = @transform_0, window_bounds = array<i64: 8, 128>}, {pipeline_mode = #tpu.pipeline_mode<synchronous>, transform_indices = @transform_1, window_bounds = array<i64: 8, 1>}, {pipeline_mode = #tpu.pipeline_mode<synchronous>, transform_indices = @transform_2, window_bounds = array<i64: 8, 1>}, {transform_indices = @transform_3, window_bounds = array<i64: 8, 128>}]} {
    %c0 = arith.constant 0 : index
    %c0_0 = arith.constant 0 : index
    %0 = vector.load %arg1[%c0, %c0_0] : memref<8x128xf32, #tpu.memory_space<vmem>>, vector<8x128xf32>
    %c0_1 = arith.constant 0 : index
    %c0_2 = arith.constant 0 : index
    %1 = vector.load %arg2[%c0_1, %c0_2] : memref<8x1xf32, #tpu.memory_space<vmem>>, vector<8x1xf32>
    %2 = vector.broadcast %1 : vector<8x1xf32> to vector<8x128xf32>
    %3 = arith.mulf %0, %2 : vector<8x128xf32>
    %c0_3 = arith.constant 0 : index
    %c0_4 = arith.constant 0 : index
    %4 = vector.load %arg3[%c0_3, %c0_4] : memref<8x1xf32, #tpu.memory_space<vmem>>, vector<8x1xf32>
    %5 = vector.broadcast %4 : vector<8x1xf32> to vector<8x128xf32>
    %6 = arith.addf %3, %5 : vector<8x128xf32>
    %cst = arith.constant 0.000000e+00 : f32
    %7 = vector.broadcast %cst : f32 to vector<8x128xf32>
    %8 = arith.maximumf %6, %7 : vector<8x128xf32>
    %c0_5 = arith.constant 0 : index
    %c0_6 = arith.constant 0 : index
    %9 = vector.load %arg4[%c0_5, %c0_6] : memref<8x128xf32, #tpu.memory_space<vmem>>, vector<8x128xf32>
    tpu.vector_store %arg4[%c0_5, %c0_6], %8 {strides = array<i32>} : memref<8x128xf32, #tpu.memory_space<vmem>>, vector<8x128xf32>,
    return
  }
  func.func @transform_0(%arg0: i32) -> (i32, i32) {
    %c0_i32 = arith.constant 0 : i32
    %c0_i32_0 = arith.constant 0 : i32
    return %c0_i32, %arg0 : i32, i32
  }
  func.func @transform_1(%arg0: i32) -> (i32, i32) {
    %c0_i32 = arith.constant 0 : i32
    %c0_i32_0 = arith.constant 0 : i32
    %c0_i32_1 = arith.constant 0 : i32
    return %c0_i32, %c0_i32_0 : i32, i32
  }
  func.func @transform_2(%arg0: i32) -> (i32, i32) {
    %c0_i32 = arith.constant 0 : i32
    %c0_i32_0 = arith.constant 0 : i32
    %c0_i32_1 = arith.constant 0 : i32
    return %c0_i32, %c0_i32_0 : i32, i32
  }
  func.func @transform_3(%arg0: i32) -> (i32, i32) {
    %c0_i32 = arith.constant 0 : i32
    %c0_i32_0 = arith.constant 0 : i32
    return %c0_i32, %arg0 : i32, i32
  }
}

</mosaic_0001>

<llo_original>
// kernel: down_wt.2
$region0: #{down_wt.2}
  #allocation0 [shape = 'u32[]', space=smem, size = 0x4, offset = 0x4, fixed_abs, tag = 'smem constant byte address 0x4 - core index']
  #allocation1 [shape = 'u32[144,128]{1,0:T(1,128)}', space=vmem, size = 0x12000, scoped, tag = 'internal scratch']
  %s0 = inlined_call_operand.vmem [shape: f32[16,128], index: 0, kind: input, shape index: {}]
  %s1 = inlined_call_operand.vmem [shape: f32[8,16], index: 1, kind: input, shape index: {}]
  %s2 = inlined_call_operand.vmem [shape: f32[8,128], index: 2, kind: output, shape index: {0}]
  %s3 = inlined_call_operand.vmem [shape: f32[1,8,1], index: 3, kind: output, shape index: {1}]
  %s4 = inlined_call_operand.vmem [shape: f32[1,8,1], index: 4, kind: output, shape index: {2}]
  %5 = xla_tuple %s2, %s3, %s4
  %s6 = sld [smem:[#allocation0]]
  $region34: #{down_wt.2} parent=0
    _
  %s8 = ssub.s32 1, %s6
  %s9 = scalar_select 0, %s8, %s6
  // Predicated region
  $region2: #{down_wt.2} parent=0 // pred_check
    _
  $region3: #{down_wt.2} parent=0 // pred_check_branch
    %11 = sbr.rel (0) target = $region5
  $region4: #{down_wt.2} parent=0 // pred_region
    _
  $region5: #{down_wt.2} parent=0 // pred_fallthru
    _
  // Predicated region
  $region6: #{down_wt.2} parent=0 // pred_check
    _
  $region7: #{down_wt.2} parent=0 // pred_check_branch
    %13 = sbr.rel (0) target = $region9
  $region8: #{down_wt.2} parent=0 // pred_region
    _
  $region9: #{down_wt.2} parent=0 // pred_fallthru
    _
  %v14 = vld [vmem:[%s1] sm:$0xff]
  %v15 = vld [vmem:[%s0] sm:$0xff]
  %v16 = vld [vmem:[%s0 + $0x8] sm:$0xff]
  %vm17 = vcmask 130048
  %v19 = vsel %vm17, %v14, 0
  %21 = vmatprep.subr.mxu0 0.0
  %22 = vmatpush1.msra.mxu0 %v15
  %23 = vmatprep.subr.mxu0 0.0
  %24 = vmatpush1.msra.mxu0 %v16
  %25 = vmatprep.subr.mxu0 0.0
  %26 = vmatpush1.msra.mxu0 0.0
  %27 = vmatprep.subr.mxu0 0.0
  %28 = vmatpush1.msra.mxu0 0.0
  %29 = vmatprep.subr.mxu0 0.0
  %30 = vmatpush1.msra.mxu0 0.0
  %31 = vmatprep.subr.mxu0 0.0
  %32 = vmatpush1.msra.mxu0 0.0
  %33 = vmatprep.subr.mxu0 0.0
  %34 = vmatpush1.msra.mxu0 0.0
  %35 = vmatprep.subr.mxu0 0.0
  %36 = vmatpush1.msra.mxu0 0.0
  %37 = vmatprep.subr.mxu0 0.0
  %38 = vmatpush1.msra.mxu0 0.0
  %39 = vmatprep.subr.mxu0 0.0
  %40 = vmatpush1.msra.mxu0 0.0
  %41 = vmatprep.subr.mxu0 0.0
  %42 = vmatpush1.msra.mxu0 0.0
  %43 = vmatprep.subr.mxu0 0.0
  %44 = vmatpush1.msra.mxu0 0.0
  %45 = vmatprep.subr.mxu0 0.0
  %46 = vmatpush1.msra.mxu0 0.0
  %47 = vmatprep.subr.mxu0 0.0
  %48 = vmatpush1.msra.mxu0 0.0
  %49 = vmatprep.subr.mxu0 0.0
  %50 = vmatpush1.msra.mxu0 0.0
  %51 = vmatprep.subr.mxu0 0.0
  %52 = vmatpush1.msra.mxu0 0.0
  %53 = vmatprep.subr.mxu0 0.0
  %54 = vmatpush1.msra.mxu0 0.0
  %55 = vmatprep.subr.mxu0 0.0
  %56 = vmatpush1.msra.mxu0 0.0
  %57 = vmatprep.subr.mxu0 0.0
  %58 = vmatpush1.msra.mxu0 0.0
  %59 = vmatprep.subr.mxu0 0.0
  %60 = vmatpush1.msra.mxu0 0.0
  %61 = vmatprep.subr.mxu0 0.0
  %62 = vmatpush1.msra.mxu0 0.0
  %63 = vmatprep.subr.mxu0 0.0
  %64 = vmatpush1.msra.mxu0 0.0
  %65 = vmatprep.subr.mxu0 0.0
  %66 = vmatpush1.msra.mxu0 0.0
  %67 = vmatprep.subr.mxu0 0.0
  %68 = vmatpush1.msra.mxu0 0.0
  %69 = vmatprep.subr.mxu0 0.0
  %70 = vmatpush1.msra.mxu0 0.0
  %71 = vmatprep.subr.mxu0 0.0
  %72 = vmatpush1.msra.mxu0 0.0
  %73 = vmatprep.subr.mxu0 0.0
  %74 = vmatpush1.msra.mxu0 0.0
  %75 = vmatprep.subr.mxu0 0.0
  %76 = vmatpush1.msra.mxu0 0.0
  %77 = vmatprep.subr.mxu0 0.0
  %78 = vmatpush1.msra.mxu0 0.0
  %79 = vmatprep.subr.mxu0 0.0
  %80 = vmatpush1.msra.mxu0 0.0
  %81 = vmatprep.subr.mxu0 0.0
  %82 = vmatpush1.msra.mxu0 0.0
  %83 = vmatprep.subr.mxu0 0.0
  %84 = vmatpush1.msra.mxu0 0.0
  %85 = vmatprep.mubr.f32.mxu0 0.0
  %86 = vmatmul.mubr.f32.gmra.mrb[0].mxu0 %v19
  %v87 = vpop.f32.mrb[0].mxu0
  %v88 = vadd.f32 0.0, %v87
  %v89 = vpop.f32.mrb[0].mxu0
  %90 = vdwg.mxu0
  %91 = vst [vmem:[%s2] sm:$0xff] %v88
  %92 = vadd.xlane.f32.xlu0 %v88
  %v93 = vpop.xlane.xlu0 %92
  %vm94 = vcmask 7168
  %95 = vst.msk [vmem:[%s3] sm:$0xff] %vm94, %v93
  %v96 = vmul.f32 %v88, %v88
  %97 = vadd.xlane.f32.xlu0 %v96
  %v98 = vpop.xlane.xlu0 %97
  %99 = vst.msk [vmem:[%s4] sm:$0xff] %vm94, %v98
  // Predicated region
  $region10: #{down_wt.2} parent=0 // pred_check
    _
  $region11: #{down_wt.2} parent=0 // pred_check_branch
    %101 = sbr.rel (0) target = $region13
  $region12: #{down_wt.2} parent=0 // pred_region
    _
  $region13: #{down_wt.2} parent=0 // pred_fallthru
    _
  // Predicated region
  $region14: #{down_wt.2} parent=0 // pred_check
    _
  $region15: #{down_wt.2} parent=0 // pred_check_branch
    %103 = sbr.rel (0) target = $region17
  $region16: #{down_wt.2} parent=0 // pred_region
    _
  $region17: #{down_wt.2} parent=0 // pred_fallthru
    _
  // Predicated region
  $region18: #{down_wt.2} parent=0 // pred_check
    _
  $region19: #{down_wt.2} parent=0 // pred_check_branch
    %105 = sbr.rel (0) target = $region21
  $region20: #{down_wt.2} parent=0 // pred_region
    _
  $region21: #{down_wt.2} parent=0 // pred_fallthru
    _
  // Predicated region
  $region22: #{down_wt.2} parent=0 // pred_check
    _
  $region23: #{down_wt.2} parent=0 // pred_check_branch
    %107 = sbr.rel (0) target = $region25
  $region24: #{down_wt.2} parent=0 // pred_region
    _
  $region25: #{down_wt.2} parent=0 // pred_fallthru
    _
  // Predicated region
  $region26: #{down_wt.2} parent=0 // pred_check
    _
  $region27: #{down_wt.2} parent=0 // pred_check_branch
    %109 = sbr.rel (0) target = $region29
  $region28: #{down_wt.2} parent=0 // pred_region
    _
  $region29: #{down_wt.2} parent=0 // pred_fallthru
    _
  // Predicated region
  $region30: #{down_wt.2} parent=0 // pred_check
    _
  $region31: #{down_wt.2} parent=0 // pred_check_branch
    %111 = sbr.rel (0) target = $region33
  $region32: #{down_wt.2} parent=0 // pred_region
    _
  $region33: #{down_wt.2} parent=0 // pred_fallthru
    _

// kernel: down_wt.3
$region0: #{down_wt.3}
  #allocation0 [shape = 'u32[]', space=smem, size = 0x4, offset = 0x4, fixed_abs, tag = 'smem constant byte address 0x4 - core index']
  #allocation1 [shape = 'u32[144,128]{1,0:T(1,128)}', space=vmem, size = 0x12000, scoped, tag = 'internal scratch']
  %s0 = inlined_call_operand.vmem [shape: f32[8,128], index: 0, kind: input, shape index: {}]
  %s1 = inlined_call_operand.vmem [shape: f32[8,1], index: 1, kind: input, shape index: {}]
  %s2 = inlined_call_operand.vmem [shape: f32[8,1], index: 2, kind: input, shape index: {}]
  %s3 = inlined_call_operand.vmem [shape: f32[8,128], index: 3, kind: output, shape index: {}]
  %s4 = sld [smem:[#allocation0]]
  $region22: #{down_wt.3} parent=0
    _
  %s6 = ssub.s32 1, %s4
  %s7 = scalar_select 0, %s6, %s4
  // Predicated region
  $region2: #{down_wt.3} parent=0 // pred_check
    _
  $region3: #{down_wt.3} parent=0 // pred_check_branch
    %9 = sbr.rel (0) target = $region5
  $region4: #{down_wt.3} parent=0 // pred_region
    _
  $region5: #{down_wt.3} parent=0 // pred_fallthru
    _
  // Predicated region
  $region6: #{down_wt.3} parent=0 // pred_check
    _
  $region7: #{down_wt.3} parent=0 // pred_check_branch
    %11 = sbr.rel (0) target = $region9
  $region8: #{down_wt.3} parent=0 // pred_region
    _
  $region9: #{down_wt.3} parent=0 // pred_fallthru
    _
  // Predicated region
  $region10: #{down_wt.3} parent=0 // pred_check
    _
  $region11: #{down_wt.3} parent=0 // pred_check_branch
    %13 = sbr.rel (0) target = $region13
  $region12: #{down_wt.3} parent=0 // pred_region
    _
  $region13: #{down_wt.3} parent=0 // pred_fallthru
    _
  %v14 = vld [vmem:[%s0] sm:$0xff]
  %v15 = vld [vmem:[%s1] sm:$0xff]
  %17 = vset.pattern.permute.xlu0 0
  %18 = vperm.xlu0 %17, %v15
  %v19 = vpop.permute.xlu0 %18
  %v21 = vmul.f32 %v14, %v19
  %v22 = vld [vmem:[%s2] sm:$0xff]
  %24 = vset.pattern.permute.xlu0 0
  %25 = vperm.xlu0 %24, %v22
  %v26 = vpop.permute.xlu0 %25
  %v28 = vadd.f32 %v21, %v26
  %v29 = vmax.f32 %v28, 0.0
  %30 = vst [vmem:[%s3] sm:$0xff] %v29
  // Predicated region
  $region14: #{down_wt.3} parent=0 // pred_check
    _
  $region15: #{down_wt.3} parent=0 // pred_check_branch
    %32 = sbr.rel (0) target = $region17
  $region16: #{down_wt.3} parent=0 // pred_region
    _
  $region17: #{down_wt.3} parent=0 // pred_fallthru
    _
  // Predicated region
  $region18: #{down_wt.3} parent=0 // pred_check
    _
  $region19: #{down_wt.3} parent=0 // pred_check_branch
    %34 = sbr.rel (0) target = $region21
  $region20: #{down_wt.3} parent=0 // pred_region
    _
  $region21: #{down_wt.3} parent=0 // pred_fallthru
    _

</llo_original>
